<compile_context>
chip_gen: v7x
topology: tpu7x:2x2x1
jax: 0.10.0
libtpu: 0.0.40
codegen_flags: <defaults>
</compile_context>

<pallas_src>
import functools

import numpy as np

import jax
import jax.numpy as jnp
from jax.experimental import pallas as pl
from jax.experimental.pallas import tpu as pltpu


def _round_up(n: int, m: int) -> int:
    return ((n + m - 1) // m) * m


def _dnf_eo_kernel(x_ref, wc_ref, wd_ref, cb_ref, yrows_ref, o_ref):
    """One batch tile of the full forward pass.

    x_ref    : [TB, P]   input predicate activations (bf16 by default, pipelined)
    wc_ref   : [P,  Cp]  conjunction weights, pre-transposed + C-padded (VMEM-resident)
    wd_ref   : [Cp, Y]   disjunction weights, pre-transposed + C-padded (VMEM-resident)
    cb_ref   : [1,  Cp]  f32 conjunction bias  delta*(max|Wc| - sum|Wc|)   (resident)
    yrows_ref: [3,  Y]   f32 rows: [disj_bias, eo_bias, eo_off_diag_value] (resident)
    o_ref    : [TB, Y]   f32 output logits tile
    """
    x = x_ref[...]

    # --- conjunction semi-symbolic layer (bias hoisted to wrapper) ---
    conj = jnp.dot(x, wc_ref[...], preferred_element_type=jnp.float32) + cb_ref[...]
    h = jnp.tanh(conj)                      # f32 tanh (v5e EUP has no bf16)

    yrows = yrows_ref[...]
    disj_bias = yrows[0:1, :]
    eo_bias = yrows[1:2, :]
    eo_val = yrows[2:3, :]

    # --- disjunction semi-symbolic layer ---
    disj = jnp.dot(h.astype(wd_ref.dtype), wd_ref[...],
                   preferred_element_type=jnp.float32) + disj_bias

    # --- extra tanh from DNFClassifierEO.forward ---
    t = jnp.tanh(disj)

    # --- exactly-one (EO) layer: We has zero diagonal and a constant per-row
    #     off-diagonal v_j, so (t @ We.T)[:, j] = v_j * (rowsum(t) - t[:, j]). ---
    row_sum = jnp.sum(t, axis=-1, keepdims=True)
    o_ref[...] = (eo_val * row_sum - eo_val * t + eo_bias).astype(o_ref.dtype)


def _vmem_budget(batch, num_preds, c_pad, num_classes, block_b, in_itemsize):
    """Pick the batch tile so resident weights + double-buffered tiles + f32 temporaries
    fit a 64 MiB/TC VMEM (v7x) with headroom; derive the matching scoped-VMEM limit."""
    row_align = 16  # safe sublane granularity for both f32 and bf16 tiles
    # Bytes per tile row: double-buffered x and out tiles + ~2 f32 [tb, Cp] temporaries
    # (conj / tanh) materialized inside the kernel.
    per_row = 2 * num_preds * in_itemsize + 2 * num_classes * 4 + 2 * c_pad * 4
    # Resident inputs; conservatively assume the pipeline still double-buffers them.
    resident = 2 * ((num_preds * c_pad + c_pad * num_classes) * in_itemsize
                    + c_pad * 4 + 3 * num_classes * 4)
    budget = 40 * 1024 * 1024
    avail = budget - resident
    if avail > row_align * per_row:
        tb_cap = max(row_align, (avail // per_row) // row_align * row_align)
    else:
        tb_cap = row_align
    # TODO(synk): if P*Cp weight bytes alone approach the budget (very large rule sets),
    # add a K-tiling grid axis ("arbitrary") over num_preds with a VMEM accumulator
    # instead of keeping Wc^T fully resident.
    tb = max(row_align, min(int(block_b), _round_up(batch, row_align), int(tb_cap)))
    need = resident + tb * per_row + (4 << 20)
    vmem_limit = int(min(64 << 20, max(32 << 20, need)))
    return tb, vmem_limit


@functools.partial(jax.jit, static_argnames=("block_b", "use_bf16"))
def _dnf_eo_forward(x, w_conj, w_disj, w_eo, delta, *, block_b, use_bf16):
    batch, num_preds = x.shape
    num_conjuncts = w_conj.shape[0]
    num_classes = w_disj.shape[0]
    f32 = jnp.float32
    mxu_dtype = jnp.bfloat16 if use_bf16 else f32
    itemsize = jnp.dtype(mxu_dtype).itemsize

    # Weight-only semi-symbolic biases (independent of x; hoisted out of the kernel).
    abs_wc = jnp.abs(w_conj).astype(f32)
    conj_bias = (delta * (abs_wc.max(axis=1) - abs_wc.sum(axis=1))).reshape(1, num_conjuncts)
    abs_wd = jnp.abs(w_disj).astype(f32)
    disj_bias = (delta * (abs_wd.sum(axis=1) - abs_wd.max(axis=1))).reshape(1, num_classes)
    abs_we = jnp.abs(w_eo).astype(f32)
    eo_bias = (delta * (abs_we.max(axis=1) - abs_we.sum(axis=1))).reshape(1, num_classes)

    # Per-class off-diagonal EO weight (the module freezes it at -6, zero diagonal).
    if num_classes > 1:
        off_mask = 1.0 - jnp.eye(num_classes, dtype=f32)
        eo_val = jnp.sum(w_eo.astype(f32) * off_mask, axis=1) / (num_classes - 1)
    else:
        eo_val = jnp.zeros((num_classes,), f32)

    # Pack the three tiny per-class rows into one resident input: [disj_bias; eo_bias; eo_val].
    yrows = jnp.concatenate(
        [disj_bias, eo_bias, eo_val.reshape(1, num_classes)], axis=0)          # [3, Y] f32

    # MXU inputs in bf16 (f32 accumulate); weights pre-transposed to [in, out].
    # Zero-pad the conjunct axis to a lane-full multiple of 128: padded columns get
    # bias 0 -> tanh(0)=0 -> zero Wd^T rows contribute nothing, so this is exact.
    c_pad = _round_up(num_conjuncts, 128)
    wc_t = w_conj.T.astype(mxu_dtype)                                           # [P, C]
    wd_t = w_disj.T.astype(mxu_dtype)                                           # [C, Y]
    if c_pad != num_conjuncts:
        wc_t = jnp.pad(wc_t, ((0, 0), (0, c_pad - num_conjuncts)))
        wd_t = jnp.pad(wd_t, ((0, c_pad - num_conjuncts), (0, 0)))
        conj_bias = jnp.pad(conj_bias, ((0, 0), (0, c_pad - num_conjuncts)))
    # TODO(synk): padding num_preds to 128 would further improve MXU lane utilization,
    # but requires re-materializing x in HBM; only worth it if the caller already pads.

    # No-op if the caller already supplies bf16 activations (preferred: avoids a copy).
    x = x.astype(mxu_dtype)

    tb, vmem_limit = _vmem_budget(batch, num_preds, c_pad, num_classes, block_b, itemsize)

    resident = lambda shape: pl.BlockSpec(shape, lambda i: (0, 0))

    out = pl.pallas_call(
        _dnf_eo_kernel,
        out_shape=jax.ShapeDtypeStruct((batch, num_classes), f32),
        grid=(pl.cdiv(batch, tb),),            # ragged last tile handled by Pallas; no x pad copy
        in_specs=[
            pl.BlockSpec((tb, num_preds), lambda i: (i, 0)),   # x tile (double-buffered)
            resident((num_preds, c_pad)),                      # Wc^T (VMEM-resident)
            resident((c_pad, num_classes)),                    # Wd^T (VMEM-resident)
            resident((1, c_pad)),                              # conjunction bias
            resident((3, num_classes)),                        # [disj_bias; eo_bias; eo_val]
        ],
        out_specs=pl.BlockSpec((tb, num_classes), lambda i: (i, 0)),
        compiler_params=pltpu.CompilerParams(
            dimension_semantics=("parallel",),                 # v7x: split batch over 2 TCs
            vmem_limit_bytes=vmem_limit,
        ),
    )(x, wc_t, wd_t, conj_bias, yrows)
    return out


def _check_eo_structure(w_eo) -> None:
    """The kernel replaces t @ We^T with v_j*(rowsum(t) - t_j); exact only if We has a
    zero diagonal and a constant off-diagonal value per row (the module freezes it at
    -6 / 0).  Host-side check on concrete weights; skip (check_eo=False) under jit."""
    we = np.asarray(jax.device_get(w_eo), dtype=np.float32)
    y = we.shape[0]
    if not np.allclose(np.diag(we), 0.0, atol=1e-6):
        raise ValueError("EO layer diagonal must be zero for the rowsum identity.")
    if y > 1:
        off = we[~np.eye(y, dtype=bool)].reshape(y, y - 1)
        if not np.allclose(off.max(axis=1), off.min(axis=1), atol=1e-6):
            raise ValueError("EO off-diagonal entries must be constant per row; use an "
                             "explicit matmul fallback if the EO layer is trained.")


def dnf_classifier_eo_forward(x, w_conj, w_disj, w_eo, delta=1.0, *,
                              block_b=1024, use_bf16=True, check_eo=True):
    """Pallas forward for DNFClassifierEO.

    x       : [B, num_preds]   (bf16 preferred; f32 accepted)
    w_conj  : [num_conjuncts, num_preds]
    w_disj  : [num_classes, num_conjuncts]
    w_eo    : [num_classes, num_classes]  (frozen -6 off-diagonal, 0 diagonal)
    """
    if check_eo:
        _check_eo_structure(w_eo)
    return _dnf_eo_forward(x, w_conj, w_disj, w_eo, delta,
                           block_b=block_b, use_bf16=use_bf16)


def init_params(key, num_preds, num_conjuncts, num_classes):
    """Parameter init mirroring the module's __init__ ('normal' init; frozen EO layer)."""
    k1, k2 = jax.random.split(key)
    w_conj = 0.1 * jax.random.normal(k1, (num_conjuncts, num_preds), jnp.float32)
    w_disj = 0.1 * jax.random.normal(k2, (num_classes, num_conjuncts), jnp.float32)
    w_eo = jnp.full((num_classes, num_classes), -6.0, jnp.float32)
    w_eo = w_eo * (1.0 - jnp.eye(num_classes, dtype=jnp.float32))  # zero diagonal
    return w_conj, w_disj, w_eo


def _reference_forward(x, w_conj, w_disj, w_eo, delta=1.0):
    """Pure-JAX reference of the module math (f32 HIGHEST-precision matmuls)."""
    hi = jax.lax.Precision.HIGHEST
    abs_wc = jnp.abs(w_conj)
    conj = jnp.dot(x, w_conj.T, precision=hi) + delta * (abs_wc.max(1) - abs_wc.sum(1))[None, :]
    h = jnp.tanh(conj)
    abs_wd = jnp.abs(w_disj)
    disj = jnp.dot(h, w_disj.T, precision=hi) + delta * (abs_wd.sum(1) - abs_wd.max(1))[None, :]
    t = jnp.tanh(disj)
    abs_we = jnp.abs(w_eo)
    return jnp.dot(t, w_eo.T, precision=hi) + delta * (abs_we.max(1) - abs_we.sum(1))[None, :]


if __name__ == "__main__":
    # Small shapes consistent with the module's forward: input is [batch, num_preds].
    batch, num_preds, num_conjuncts, num_classes = 2, 32, 64, 8
    delta = 1.0

    key = jax.random.PRNGKey(0)
    kx, kp = jax.random.split(key)
    # Predicate activations typically live in [-1, 1].
    x_f32 = jnp.tanh(jax.random.normal(kx, (batch, num_preds), jnp.float32))
    w_conj, w_disj, w_eo = init_params(kp, num_preds, num_conjuncts, num_classes)

    # Supply bf16 activations so the kernel's x DMA is half-width with no wrapper copy.
    x_bf16 = x_f32.astype(jnp.bfloat16)

    out = dnf_classifier_eo_forward(x_bf16, w_conj, w_disj, w_eo, delta)
    out = jax.block_until_ready(out)

    ref = _reference_forward(x_bf16.astype(jnp.float32), w_conj, w_disj, w_eo, delta)
    assert out.shape == (batch, num_classes)
    # bf16 MXU inputs -> slightly looser tolerance than the f32 path.
    assert jnp.allclose(out, ref, atol=2e-2, rtol=2e-2), "mismatch vs reference"

    print("KERNEL_OK")
</pallas_src>

<mosaic_0001>
module attributes {stable_mosaic.version = 11 : i64} {
  func.func @_dnf_eo_kernel(%arg0: i32, %arg1: memref<16x32xbf16, #tpu.memory_space<vmem>>, %arg2: memref<32x128xbf16, #tpu.memory_space<vmem>>, %arg3: memref<128x8xbf16, #tpu.memory_space<vmem>>, %arg4: memref<1x128xf32, #tpu.memory_space<vmem>>, %arg5: memref<3x8xf32, #tpu.memory_space<vmem>>, %arg6: memref<16x8xf32, #tpu.memory_space<vmem>>) attributes {dimension_semantics = [#tpu.dimension_semantics<parallel>], iteration_bounds = array<i64: 1>, scalar_prefetch = 0 : i64, scratch_operands = 0 : i64, tpu.core_type = #tpu.core_type<tc>, window_params = [{transform_indices = @transform_0, window_bounds = array<i64: 16, 32>}, {pipeline_mode = #tpu.pipeline_mode<synchronous>, transform_indices = @transform_1, window_bounds = array<i64: 32, 128>}, {pipeline_mode = #tpu.pipeline_mode<synchronous>, transform_indices = @transform_2, window_bounds = array<i64: 128, 8>}, {pipeline_mode = #tpu.pipeline_mode<synchronous>, transform_indices = @transform_3, window_bounds = array<i64: 1, 128>}, {pipeline_mode = #tpu.pipeline_mode<synchronous>, transform_indices = @transform_4, window_bounds = array<i64: 3, 8>}, {transform_indices = @transform_5, window_bounds = array<i64: 16, 8>}]} {
    %c0 = arith.constant 0 : index
    %c0_0 = arith.constant 0 : index
    %0 = vector.load %arg1[%c0, %c0_0] : memref<16x32xbf16, #tpu.memory_space<vmem>>, vector<16x32xbf16>
    %c0_1 = arith.constant 0 : index
    %c0_2 = arith.constant 0 : index
    %1 = vector.load %arg2[%c0_1, %c0_2] : memref<32x128xbf16, #tpu.memory_space<vmem>>, vector<32x128xbf16>
    %cst = arith.constant dense<0.000000e+00> : vector<16x128xf32>
    %2 = tpu.matmul %0, %1, %cst {dimension_numbers = #tpu.dot_dimension_numbers<[1], [0], [0], [1], [0, 0, 1, 1], [], []>} : vector<16x32xbf16>, vector<32x128xbf16>, vector<16x128xf32> -> vector<16x128xf32>
    %c0_3 = arith.constant 0 : index
    %c0_4 = arith.constant 0 : index
    %3 = vector.load %arg4[%c0_3, %c0_4] : memref<1x128xf32, #tpu.memory_space<vmem>>, vector<1x128xf32>
    %4 = vector.broadcast %3 : vector<1x128xf32> to vector<16x128xf32>
    %5 = arith.addf %2, %4 : vector<16x128xf32>
    %6 = math.tanh %5 : vector<16x128xf32>
    %c0_5 = arith.constant 0 : index
    %c0_6 = arith.constant 0 : index
    %7 = vector.load %arg5[%c0_5, %c0_6] : memref<3x8xf32, #tpu.memory_space<vmem>>, vector<3x8xf32>
    %8 = vector.extract_strided_slice %7 {offsets = [0, 0], sizes = [1, 8], strides = [1, 1]} : vector<3x8xf32> to vector<1x8xf32>
    %9 = vector.extract_strided_slice %7 {offsets = [1, 0], sizes = [1, 8], strides = [1, 1]} : vector<3x8xf32> to vector<1x8xf32>
    %10 = vector.extract_strided_slice %7 {offsets = [2, 0], sizes = [1, 8], strides = [1, 1]} : vector<3x8xf32> to vector<1x8xf32>
    %11 = arith.truncf %6 : vector<16x128xf32> to vector<16x128xbf16>
    %c0_7 = arith.constant 0 : index
    %c0_8 = arith.constant 0 : index
    %12 = vector.load %arg3[%c0_7, %c0_8] : memref<128x8xbf16, #tpu.memory_space<vmem>>, vector<128x8xbf16>
    %cst_9 = arith.constant dense<0.000000e+00> : vector<16x8xf32>
    %13 = tpu.matmul %11, %12, %cst_9 {dimension_numbers = #tpu.dot_dimension_numbers<[1], [0], [0], [1], [0, 0, 1, 1], [], []>} : vector<16x128xbf16>, vector<128x8xbf16>, vector<16x8xf32> -> vector<16x8xf32>
    %14 = vector.broadcast %8 : vector<1x8xf32> to vector<16x8xf32>
    %15 = arith.addf %13, %14 : vector<16x8xf32>
    %16 = math.tanh %15 : vector<16x8xf32>
    %cst_10 = arith.constant dense<0.000000e+00> : vector<16xf32>
    %17 = vector.multi_reduction <add>, %16, %cst_10 [1] : vector<16x8xf32> to vector<16xf32>
    %18 = vector.shape_cast %17 : vector<16xf32> to vector<16x1xf32>
    %19 = vector.broadcast %10 : vector<1x8xf32> to vector<16x8xf32>
    %20 = vector.broadcast %18 : vector<16x1xf32> to vector<16x8xf32>
    %21 = arith.mulf %19, %20 : vector<16x8xf32>
    %22 = vector.broadcast %10 : vector<1x8xf32> to vector<16x8xf32>
    %23 = arith.mulf %22, %16 : vector<16x8xf32>
    %24 = arith.subf %21, %23 : vector<16x8xf32>
    %25 = vector.broadcast %9 : vector<1x8xf32> to vector<16x8xf32>
    %26 = arith.addf %24, %25 : vector<16x8xf32>
    %c0_11 = arith.constant 0 : index
    %c0_12 = arith.constant 0 : index
    %27 = vector.load %arg6[%c0_11, %c0_12] : memref<16x8xf32, #tpu.memory_space<vmem>>, vector<16x8xf32>
    tpu.vector_store %arg6[%c0_11, %c0_12], %26 {strides = array<i32>} : memref<16x8xf32, #tpu.memory_space<vmem>>, vector<16x8xf32>,
    return
  }
  func.func @transform_0(%arg0: i32) -> (i32, i32) {
    %c0_i32 = arith.constant 0 : i32
    %c0_i32_0 = arith.constant 0 : i32
    return %arg0, %c0_i32 : i32, i32
  }
  func.func @transform_1(%arg0: i32) -> (i32, i32) {
    %c0_i32 = arith.constant 0 : i32
    %c0_i32_0 = arith.constant 0 : i32
    %c0_i32_1 = arith.constant 0 : i32
    return %c0_i32, %c0_i32_0 : i32, i32
  }
  func.func @transform_2(%arg0: i32) -> (i32, i32) {
    %c0_i32 = arith.constant 0 : i32
    %c0_i32_0 = arith.constant 0 : i32
    %c0_i32_1 = arith.constant 0 : i32
    return %c0_i32, %c0_i32_0 : i32, i32
  }
  func.func @transform_3(%arg0: i32) -> (i32, i32) {
    %c0_i32 = arith.constant 0 : i32
    %c0_i32_0 = arith.constant 0 : i32
    %c0_i32_1 = arith.constant 0 : i32
    return %c0_i32, %c0_i32_0 : i32, i32
  }
  func.func @transform_4(%arg0: i32) -> (i32, i32) {
    %c0_i32 = arith.constant 0 : i32
    %c0_i32_0 = arith.constant 0 : i32
    %c0_i32_1 = arith.constant 0 : i32
    return %c0_i32, %c0_i32_0 : i32, i32
  }
  func.func @transform_5(%arg0: i32) -> (i32, i32) {
    %c0_i32 = arith.constant 0 : i32
    %c0_i32_0 = arith.constant 0 : i32
    return %arg0, %c0_i32 : i32, i32
  }
}

</mosaic_0001>

<llo_original>
// kernel: _dnf_eo_forward.1
$region0: #{_dnf_eo_forward.1}
  #allocation0 [shape = 'u32[]', space=smem, size = 0x4, offset = 0x4, fixed_abs, tag = 'smem constant byte address 0x4 - core index']
  #allocation1 [shape = 'u32[144,128]{1,0:T(1,128)}', space=vmem, size = 0x12000, scoped, tag = 'internal scratch']
  %s0 = inlined_call_operand.vmem [shape: bf16[2,32], index: 0, kind: input, shape index: {}]
  %s1 = inlined_call_operand.vmem [shape: bf16[32,128], index: 1, kind: input, shape index: {}]
  %s2 = inlined_call_operand.vmem [shape: bf16[128,8], index: 2, kind: input, shape index: {}]
  %s3 = inlined_call_operand.vmem [shape: f32[1,128], index: 3, kind: input, shape index: {}]
  %s4 = inlined_call_operand.vmem [shape: f32[3,8], index: 4, kind: input, shape index: {}]
  %s5 = inlined_call_operand.hbm [shape: f32[2,8], index: 5, kind: output, shape index: {}]
  %s6 = sld [smem:[#allocation0]]
  $region30: #{_dnf_eo_forward.1} parent=0
    _
  %s8 = ssub.s32 1, %s6
  %s9 = scalar_select 0, %s8, %s6
  $region1: #{_dnf_eo_forward.1} parent=0
    #allocation2 [shape = 'u8[8192]{0}', space=vmem, size = 0x2000, scoped, tag = 'output window, operand 0, single buffered']
    #allocation3 [shape = 's32[1]{0}', space=sflag, size = 0x4, scoped, tag = 'scoped memory for _dnf_eo_forward.1']
    %10 = vsyncpa [#allocation3], 0
    // Predicated region
    $region2: #{_dnf_eo_forward.1} parent=1 // pred_check
      _
    $region3: #{_dnf_eo_forward.1} parent=1 // pred_check_branch
      %12 = sbr.rel (0) target = $region5
    $region4: #{_dnf_eo_forward.1} parent=1 // pred_region
      _
    $region5: #{_dnf_eo_forward.1} parent=1 // pred_fallthru
      _
    // Predicated region
    $region6: #{_dnf_eo_forward.1} parent=1 // pred_check
      _
    $region7: #{_dnf_eo_forward.1} parent=1 // pred_check_branch
      %14 = sbr.rel (0) target = $region9
    $region8: #{_dnf_eo_forward.1} parent=1 // pred_region
      _
    $region9: #{_dnf_eo_forward.1} parent=1 // pred_fallthru
      _
    // Predicated region
    $region10: #{_dnf_eo_forward.1} parent=1 // pred_check
      _
    $region11: #{_dnf_eo_forward.1} parent=1 // pred_check_branch
      %16 = sbr.rel (0) target = $region13
    $region12: #{_dnf_eo_forward.1} parent=1 // pred_region
      _
    $region13: #{_dnf_eo_forward.1} parent=1 // pred_fallthru
      _
    // Predicated region
    $region14: #{_dnf_eo_forward.1} parent=1 // pred_check
      _
    $region15: #{_dnf_eo_forward.1} parent=1 // pred_check_branch
      %18 = sbr.rel (0) target = $region17
    $region16: #{_dnf_eo_forward.1} parent=1 // pred_region
      _
    $region17: #{_dnf_eo_forward.1} parent=1 // pred_fallthru
      _
    // Predicated region
    $region18: #{_dnf_eo_forward.1} parent=1 // pred_check
      _
    $region19: #{_dnf_eo_forward.1} parent=1 // pred_check_branch
      %20 = sbr.rel (0) target = $region21
    $region20: #{_dnf_eo_forward.1} parent=1 // pred_region
      _
    $region21: #{_dnf_eo_forward.1} parent=1 // pred_fallthru
      _
    %v22 = vld [vmem:[%s0] sm:$0x1]
    %v23 = vld [vmem:[%s0 + $0x1] sm:$0x1]
    %v24 = vld [vmem:[%s0 + $0x2] sm:$0x1]
    %v25 = vld [vmem:[%s0 + $0x3] sm:$0x1]
    %v26 = vld [vmem:[%s0 + $0x4] sm:$0x1]
    %v27 = vld [vmem:[%s0 + $0x5] sm:$0x1]
    %v28 = vld [vmem:[%s0 + $0x6] sm:$0x1]
    %v29 = vld [vmem:[%s0 + $0x7] sm:$0x1]
    %v30 = vld [vmem:[%s1] sm:$0xf]
    %v31 = vld [vmem:[%s1 + $0x4] sm:$0xf]
    %v32 = vld [vmem:[%s1 + $0x8] sm:$0xf]
    %v33 = vld [vmem:[%s1 + $0xc] sm:$0xf]
    %v34 = vld [vmem:[%s3] sm:$0x1]
    %v36 = vlaneseq
    %v37 = vshrl.u32 %v36, 7
    %v38 = vsub.s32 0, %v37
    %v39 = vrot.slane %v34, %v38
    %v49 = vcombine.low %v22, %v23
    %v50 = vcombine.low %v24, %v25
    %v51 = vcombine.low %v26, %v27
    %v52 = vcombine.low %v28, %v29
    %v54 = vunpack.c.l.s4 1966171168
    %v55 = vunpack.c.0.s8 %v54
    %v56 = vlaneseq
    %v57 = vshrl.u32 %v56, 7
    %v58 = vsub.s32 %v55, %v57
    %v59 = vrot.slane %v49, %v58
    %v61 = vunpack.c.l.s4 1966171168
    %v62 = vunpack.c.0.s8 %v61
    %v63 = vlaneseq
    %v64 = vshrl.u32 %v63, 7
    %v65 = vsub.s32 %v62, %v64
    %v66 = vrot.slane %v50, %v65
    %v68 = vunpack.c.l.s4 1966171168
    %v69 = vunpack.c.0.s8 %v68
    %v70 = vlaneseq
    %v71 = vshrl.u32 %v70, 7
    %v72 = vsub.s32 %v69, %v71
    %v73 = vrot.slane %v51, %v72
    %v75 = vunpack.c.l.s4 1966171168
    %v76 = vunpack.c.0.s8 %v75
    %v77 = vlaneseq
    %v78 = vshrl.u32 %v77, 7
    %v79 = vsub.s32 %v76, %v78
    %v80 = vrot.slane %v52, %v79
    %v81 = vcombine.low %v59, %v66
    %v82 = vcombine.low %v73, %v80
    %v84 = vunpack.c.l.s4 1966171168
    %v85 = vunpack.c.0.s8 %v84
    %v86 = vlaneseq
    %v87 = vshrl.u32 %v86, 7
    %v88 = vsub.s32 %v85, %v87
    %v89 = vrot.slane %v81, %v88
    %v91 = vunpack.c.l.s4 1966171168
    %v92 = vunpack.c.0.s8 %v91
    %v93 = vlaneseq
    %v94 = vshrl.u32 %v93, 7
    %v95 = vsub.s32 %v92, %v94
    %v96 = vrot.slane %v82, %v95
    %v97 = vcombine.low %v89, %v96
    %v102 = vunpack.c.l.b16 %v30
    %v103 = vunpack.c.l.b16 %v31
    %v104 = vunpack.c.l.b16 %v32
    %v105 = vunpack.c.l.b16 %v33
    %v106 = vpack.c.b16 %v103, %v102
    %v107 = vpack.c.b16 %v105, %v104
    %vm110 = vcmask 261120
    %v112 = vsel %vm110, %v97, 0
    %114 = vmatprep.subr.bf16.mxu0 0
    %115 = vmatpush1.bf16.msra.mxu0 %v106
    %116 = vmatprep.subr.bf16.mxu0 0
    %117 = vmatpush1.bf16.msra.mxu0 %v107
    %118 = vmatprep.subr.bf16.mxu0 0
    %119 = vmatpush1.bf16.msra.mxu0 0
    %120 = vmatprep.subr.bf16.mxu0 0
    %121 = vmatpush1.bf16.msra.mxu0 0
    %122 = vmatprep.subr.bf16.mxu0 0
    %123 = vmatpush1.bf16.msra.mxu0 0
    %124 = vmatprep.subr.bf16.mxu0 0
    %125 = vmatpush1.bf16.msra.mxu0 0
    %126 = vmatprep.subr.bf16.mxu0 0
    %127 = vmatpush1.bf16.msra.mxu0 0
    %128 = vmatprep.subr.bf16.mxu0 0
    %129 = vmatpush1.bf16.msra.mxu0 0
    %130 = vmatprep.subr.bf16.mxu0 0
    %131 = vmatpush1.bf16.msra.mxu0 0
    %132 = vmatprep.subr.bf16.mxu0 0
    %133 = vmatpush1.bf16.msra.mxu0 0
    %134 = vmatprep.subr.bf16.mxu0 0
    %135 = vmatpush1.bf16.msra.mxu0 0
    %136 = vmatprep.subr.bf16.mxu0 0
    %137 = vmatpush1.bf16.msra.mxu0 0
    %138 = vmatprep.subr.bf16.mxu0 0
    %139 = vmatpush1.bf16.msra.mxu0 0
    %140 = vmatprep.subr.bf16.mxu0 0
    %141 = vmatpush1.bf16.msra.mxu0 0
    %142 = vmatprep.subr.bf16.mxu0 0
    %143 = vmatpush1.bf16.msra.mxu0 0
    %144 = vmatprep.subr.bf16.mxu0 0
    %145 = vmatpush1.bf16.msra.mxu0 0
    %146 = vmatprep.mubr.bf16.mxu0 0
    %147 = vmatmul.mubr.bf16.gmra.mrb[0].mxu0 %v112
    %v148 = vpop.f32.mrb[0].mxu0
    %v149 = vadd.f32 %v39, %v148
    %v150 = vpop.f32.mrb[0].mxu0
    %v151 = vpop.f32.mrb[0].mxu0
    %v152 = vadd.f32 %v39, %v151
    %v153 = vpop.f32.mrb[0].mxu0
    %154 = vdwg.mxu0
    %v155 = vtanh.pop %v149
    %v156 = vtanh.pop %v152
    %v157 = vld [vmem:[%s4] sm:$0x7]
    %v158 = vpack.c.bf16 %v156, %v155
    %v159 = vld [vmem:[%s2] sm:$0xf]
    %v160 = vld [vmem:[%s2 + $0x4] sm:$0xf]
    %v161 = vld [vmem:[%s2 + $0x8] sm:$0xf]
    %v162 = vld [vmem:[%s2 + $0xc] sm:$0xf]
    %v163 = vld [vmem:[%s2 + $0x10] sm:$0xf]
    %v164 = vld [vmem:[%s2 + $0x14] sm:$0xf]
    %v165 = vld [vmem:[%s2 + $0x18] sm:$0xf]
    %v166 = vld [vmem:[%s2 + $0x1c] sm:$0xf]
    %v167 = vld [vmem:[%s2 + $0x20] sm:$0xf]
    %v168 = vld [vmem:[%s2 + $0x24] sm:$0xf]
    %v169 = vld [vmem:[%s2 + $0x28] sm:$0xf]
    %v170 = vld [vmem:[%s2 + $0x2c] sm:$0xf]
    %v171 = vld [vmem:[%s2 + $0x30] sm:$0xf]
    %v172 = vld [vmem:[%s2 + $0x34] sm:$0xf]
    %v173 = vld [vmem:[%s2 + $0x38] sm:$0xf]
    %v174 = vld [vmem:[%s2 + $0x3c] sm:$0xf]
    %v175 = vlaneseq
    %v176 = vshrl.u32 %v175, 7
    %v177 = vsub.s32 0, %v176
    %v178 = vrot.slane %v157, %v177
    %v195 = vunpack.c.l.b16 %v159
    %v196 = vunpack.c.l.b16 %v160
    %v197 = vunpack.c.l.b16 %v161
    %v198 = vunpack.c.l.b16 %v162
    %v199 = vunpack.c.l.b16 %v163
    %v200 = vunpack.c.l.b16 %v164
    %v201 = vunpack.c.l.b16 %v165
    %v202 = vunpack.c.l.b16 %v166
    %v203 = vunpack.c.l.b16 %v167
    %v204 = vunpack.c.l.b16 %v168
    %v205 = vunpack.c.l.b16 %v169
    %v206 = vunpack.c.l.b16 %v170
    %v207 = vunpack.c.l.b16 %v171
    %v208 = vunpack.c.l.b16 %v172
    %v209 = vunpack.c.l.b16 %v173
    %v210 = vunpack.c.l.b16 %v174
    %v211 = vpack.c.b16 %v196, %v195
    %v212 = vpack.c.b16 %v198, %v197
    %v213 = vpack.c.b16 %v200, %v199
    %v214 = vpack.c.b16 %v202, %v201
    %v215 = vpack.c.b16 %v204, %v203
    %v216 = vpack.c.b16 %v206, %v205
    %v217 = vpack.c.b16 %v208, %v207
    %v218 = vpack.c.b16 %v210, %v209
    %227 = vmatprep.subr.bf16.mxu0 0
    %228 = vmatpush1.bf16.msra.mxu0 %v211
    %229 = vmatprep.subr.bf16.mxu0 0
    %230 = vmatpush1.bf16.msra.mxu0 %v212
    %231 = vmatprep.subr.bf16.mxu0 0
    %232 = vmatpush1.bf16.msra.mxu0 %v213
    %233 = vmatprep.subr.bf16.mxu0 0
    %234 = vmatpush1.bf16.msra.mxu0 %v214
    %235 = vmatprep.subr.bf16.mxu0 0
    %236 = vmatpush1.bf16.msra.mxu0 %v215
    %237 = vmatprep.subr.bf16.mxu0 0
    %238 = vmatpush1.bf16.msra.mxu0 %v216
    %239 = vmatprep.subr.bf16.mxu0 0
    %240 = vmatpush1.bf16.msra.mxu0 %v217
    %241 = vmatprep.subr.bf16.mxu0 0
    %242 = vmatpush1.bf16.msra.mxu0 %v218
    %243 = vmatprep.subr.bf16.mxu0 0
    %244 = vmatpush1.bf16.msra.mxu0 0
    %245 = vmatprep.subr.bf16.mxu0 0
    %246 = vmatpush1.bf16.msra.mxu0 0
    %247 = vmatprep.subr.bf16.mxu0 0
    %248 = vmatpush1.bf16.msra.mxu0 0
    %249 = vmatprep.subr.bf16.mxu0 0
    %250 = vmatpush1.bf16.msra.mxu0 0
    %251 = vmatprep.subr.bf16.mxu0 0
    %252 = vmatpush1.bf16.msra.mxu0 0
    %253 = vmatprep.subr.bf16.mxu0 0
    %254 = vmatpush1.bf16.msra.mxu0 0
    %255 = vmatprep.subr.bf16.mxu0 0
    %256 = vmatpush1.bf16.msra.mxu0 0
    %257 = vmatprep.subr.bf16.mxu0 0
    %258 = vmatpush1.bf16.msra.mxu0 0
    %259 = vmatprep.mubr.bf16.mxu0 0
    %260 = vmatmul.mubr.bf16.gmra.mrb[0].mxu0 %v158
    %v261 = vpop.f32.mrb[0].mxu0
    %v262 = vadd.f32 %v178, %v261
    %v263 = vpop.f32.mrb[0].mxu0
    %v264 = vpop.f32.mrb[0].mxu0
    %v265 = vadd.f32 %v178, %v264
    %v266 = vpop.f32.mrb[0].mxu0
    %267 = vdwg.mxu0
    %v268 = vtanh.pop %v262
    %v269 = vtanh.pop %v265
    %vm270 = vcmask 64512
    %v271 = vsel %vm270, %v268, 0.0
    %272 = vadd.xlane.f32.xlu0 %v271
    %v273 = vpop.xlane.xlu0 %272
    %v274 = vsel %vm270, %v269, 0.0
    %275 = vadd.xlane.f32.xlu0 %v274
    %v276 = vpop.xlane.xlu0 %275
    %v277 = vlaneseq
    %v278 = vshrl.u32 %v277, 7
    %v279 = vsub.s32 2, %v278
    %v280 = vrot.slane %v157, %v279
    %v281 = vmul.f32 %v280, %v273
    %v282 = vmul.f32 %v280, %v276
    %v283 = vmul.f32 %v280, %v268
    %v284 = vmul.f32 %v280, %v269
    %v285 = vsub.f32 %v281, %v283
    %v286 = vsub.f32 %v282, %v284
    %v287 = vlaneseq
    %v288 = vshrl.u32 %v287, 7
    %v289 = vsub.s32 1, %v288
    %v290 = vrot.slane %v157, %v289
    %v291 = vadd.f32 %v285, %v290
    %v292 = vadd.f32 %v286, %v290
    %293 = vst.msk [vmem:[#allocation2] sm:$0xff] %vm270, %v291
    %294 = vst.msk [vmem:[#allocation2 + $0x8] sm:$0xff] %vm270, %v292
    // Predicated region
    $region22: #{_dnf_eo_forward.1} parent=1 // pred_check
      _
    $region23: #{_dnf_eo_forward.1} parent=1 // pred_check_branch
      %296 = sbr.rel (0) target = $region25
    $region24: #{_dnf_eo_forward.1} parent=1 // pred_region
      %s298 = ssub.s32 256, 32
      %299 = vsyncadd [#allocation3], %s298
      %s300 = sshll.u32 [#allocation2], 4
      %s301 = int_to_ptr.vmem [resolvable:$true] %s300
      %306 = dma.vmem_to_hbm [thread:$0]  %s301, 32, %s5, [#allocation3], 32, 32, 2
    $region25: #{_dnf_eo_forward.1} parent=1 // pred_fallthru
      _
    // Predicated region
    $region26: #{_dnf_eo_forward.1} parent=1 // pred_check
      _
    $region27: #{_dnf_eo_forward.1} parent=1 // pred_check_branch
      %308 = sbr.rel (0) target = $region29
    $region28: #{_dnf_eo_forward.1} parent=1 // pred_region
      %309 = dma.done [#allocation3], 256
    $region29: #{_dnf_eo_forward.1} parent=1 // pred_fallthru
      _
    %310 = vsyncpa [#allocation3], 1

</llo_original>
